<compile_context>
chip_gen: v7x
topology: tpu7x:2x2x1
jax: 0.10.0
libtpu: 0.0.40
codegen_flags: <defaults>
</compile_context>

<pallas_src>
import jax
import jax.numpy as jnp
import numpy as np
from jax import lax
from jax.experimental import pallas as pl
from jax.experimental.pallas import tpu as pltpu


# ---------------------------------------------------------------------------
# Phase 1a kernel: per-row spatial sum, full HW in one block (no masking).
# ---------------------------------------------------------------------------
def _rowsum_full_kernel(x_ref, s_ref):
    s_ref[...] = jnp.sum(x_ref[...], axis=-1, keepdims=True, dtype=jnp.float32)


# ---------------------------------------------------------------------------
# Phase 1b kernel factory: HW-tiled per-row sum with lane mask on ragged tail.
# ---------------------------------------------------------------------------
def _make_rowsum_tiled_kernel(hw_total, hw_tile):
    ragged = (hw_total % hw_tile) != 0

    def kernel(x_ref, s_ref):
        h = pl.program_id(1)

        @pl.when(h == 0)
        def _():
            s_ref[...] = jnp.zeros_like(s_ref)

        x = x_ref[...]
        if ragged:
            # OOB lanes of the last HW tile hold undefined data -> zero them.
            col = h * hw_tile + lax.broadcasted_iota(jnp.int32, x.shape, 1)
            x = jnp.where(col < hw_total, x, jnp.zeros_like(x))
        s_ref[...] += jnp.sum(x, axis=-1, keepdims=True, dtype=jnp.float32)

    return kernel


# ---------------------------------------------------------------------------
# Phase 2 kernel: streaming scale, out = x * gate[row] (f32 product, one cast).
# ---------------------------------------------------------------------------
def _apply_kernel(x_ref, g_ref, o_ref):
    o_ref[...] = (x_ref[...].astype(jnp.float32) * g_ref[...]).astype(o_ref.dtype)


# ---------------------------------------------------------------------------
# Tiny O(B*C) gate: sigmoid(conv1(y)+conv2(y)+conv3(y)) over the channel axis.
# ---------------------------------------------------------------------------
def _channel_conv_gate(y, weights):
    _, C = y.shape
    tot = jnp.zeros_like(y)
    for w in weights:
        k = w.shape[0]
        p = k // 2
        yp = jnp.pad(y, ((0, 0), (p, p)))          # zero 'same' padding
        for j in range(k):                          # 15 taps total
            tot = tot + w[j] * yp[:, j:j + C]
    return jax.nn.sigmoid(tot)


# ---------------------------------------------------------------------------
# Wrapper
# ---------------------------------------------------------------------------
def msca_pallas(x, w1, w2, w3):
    B, C, H, W = x.shape
    HW = H * W
    R = B * C
    itemsize = jnp.dtype(x.dtype).itemsize

    # No padding/slicing copies: ragged edge blocks handled in/by the kernels.
    xf = x.reshape(R, HW)

    # --- tile selection: dtype-aware sublane base, megacore-friendly rows ---
    sub_base = max(8, 32 // itemsize)          # 8 (f32), 16 (bf16), 32 (int8)
    if R <= sub_base:
        row_tile = R                           # full extent: exempt from 8-rule
    else:
        # want >= 2 row tiles so v7x megacore splits phase 1; keep <= 512 rows
        half = max(sub_base, (pl.cdiv(R, 2) // sub_base) * sub_base)
        row_tile = min(512, half)
    nr = pl.cdiv(R, row_tile)

    # HW tile: ~2-4 MiB blocks, lane-dense multiples of 128 (or full extent).
    target_tile_bytes = 4 * 1024 * 1024
    lane_cap = 2048 if itemsize >= 4 else 4096
    max_lanes = max(128, (target_tile_bytes // (row_tile * itemsize)) // 128 * 128)
    hw_tile = min(lane_cap, max_lanes)
    if HW <= hw_tile:
        hw_tile = HW                           # full extent: exempt from 128-rule
    nh = pl.cdiv(HW, hw_tile)

    # VMEM budget: phase 2 double-buffers in + out tiles (4 * tile) + gate col.
    # Clamp below v7x's 32 MiB scoped default (tiles capped at 4 MiB above).
    tile_bytes = row_tile * hw_tile * itemsize
    vmem_need = 4 * tile_bytes + 8 * row_tile * 4 + (64 << 10)
    vmem_limit = int(min(28 << 20, max(int(1.5 * vmem_need), 16 << 20)))

    # ---- phase 1: per-row spatial sums ----------------------------------
    if row_tile * HW * itemsize <= target_tile_bytes:
        # Common CNN case: full-HW block per row tile; no reduction axis,
        # no masking, grid steps = nr only.
        sums = pl.pallas_call(
            _rowsum_full_kernel,
            out_shape=jax.ShapeDtypeStruct((R, 1), jnp.float32),
            grid_spec=pltpu.PrefetchScalarGridSpec(
                num_scalar_prefetch=0,
                grid=(nr,),
                in_specs=[pl.BlockSpec((row_tile, HW), lambda r: (r, 0))],
                out_specs=pl.BlockSpec((row_tile, 1), lambda r: (r, 0)),
            ),
            compiler_params=pltpu.CompilerParams(
                dimension_semantics=("parallel",),
                vmem_limit_bytes=vmem_limit),
            cost_estimate=pl.CostEstimate(
                flops=R * HW, transcendentals=0,
                bytes_accessed=R * HW * itemsize + R * 4),
        )(xf)
    else:
        # Large feature maps: HW-tiled accumulation, lane mask on ragged tail.
        sums = pl.pallas_call(
            _make_rowsum_tiled_kernel(HW, hw_tile),
            out_shape=jax.ShapeDtypeStruct((R, 1), jnp.float32),
            grid_spec=pltpu.PrefetchScalarGridSpec(
                num_scalar_prefetch=0,
                grid=(nr, nh),
                in_specs=[pl.BlockSpec((row_tile, hw_tile), lambda r, h: (r, h))],
                out_specs=pl.BlockSpec((row_tile, 1), lambda r, h: (r, 0)),
            ),
            compiler_params=pltpu.CompilerParams(
                dimension_semantics=("parallel", "arbitrary"),
                vmem_limit_bytes=vmem_limit),
            cost_estimate=pl.CostEstimate(
                flops=R * HW, transcendentals=0,
                bytes_accessed=R * HW * itemsize + R * 4),
        )(xf)

    # ---- tiny O(B*C) gate math in plain JAX (15 taps + sigmoid, fp32) ----
    mean = (sums[:, 0] / jnp.float32(HW)).reshape(B, C)
    gate = _channel_conv_gate(mean, [w1, w2, w3])          # (B, C) f32
    gate_col = gate.reshape(R, 1).astype(jnp.float32)

    # ---- phase 2: streaming x * gate (both axes parallel -> 2 TCs on v7x) --
    out = pl.pallas_call(
        _apply_kernel,
        out_shape=jax.ShapeDtypeStruct((R, HW), x.dtype),
        grid_spec=pltpu.PrefetchScalarGridSpec(
            num_scalar_prefetch=0,
            grid=(nr, nh),
            in_specs=[pl.BlockSpec((row_tile, hw_tile), lambda r, h: (r, h)),
                      pl.BlockSpec((row_tile, 1), lambda r, h: (r, 0))],
            out_specs=pl.BlockSpec((row_tile, hw_tile), lambda r, h: (r, h)),
        ),
        compiler_params=pltpu.CompilerParams(
            dimension_semantics=("parallel", "parallel"),
            vmem_limit_bytes=vmem_limit),
        cost_estimate=pl.CostEstimate(
            flops=R * HW, transcendentals=0,
            bytes_accessed=2 * R * HW * itemsize + R * 4),
    )(xf, gate_col)

    return out.reshape(B, C, H, W)


# ---------------------------------------------------------------------------
# Pure-JAX reference matching the PyTorch forward exactly.
# ---------------------------------------------------------------------------
def msca_ref(x, w1, w2, w3):
    B, C, H, W = x.shape
    y = jnp.mean(x, axis=(2, 3))                               # (B, C)

    def conv1d_same(y, w):
        k = w.shape[0]
        p = k // 2
        yp = jnp.pad(y, ((0, 0), (p, p)))
        return sum(w[j] * yp[:, j:j + C] for j in range(k))

    tot = conv1d_same(y, w1) + conv1d_same(y, w2) + conv1d_same(y, w3)
    gate = jax.nn.sigmoid(tot)                                 # (B, C)
    return x * gate[:, :, None, None]


if __name__ == "__main__":
    key = jax.random.PRNGKey(0)
    kx, k1, k2, k3 = jax.random.split(key, 4)

    B, C, H, W = 2, 4, 16, 16
    x = jax.random.normal(kx, (B, C, H, W), dtype=jnp.float32)

    # Deterministic Conv1d weights (bias=False). PyTorch init is
    # U(-1/sqrt(in_ch*k), 1/sqrt(in_ch*k)); reproduce the scale with JAX RNG.
    def init_w(k, ksz):
        bound = 1.0 / np.sqrt(1 * ksz)
        return jax.random.uniform(k, (ksz,), jnp.float32, -bound, bound)

    w1 = init_w(k1, 3)
    w2 = init_w(k2, 5)
    w3 = init_w(k3, 7)

    out = msca_pallas(x, w1, w2, w3)
    out = jax.block_until_ready(out)

    ref = msca_ref(x, w1, w2, w3)
    assert out.shape == ref.shape
    np.testing.assert_allclose(np.asarray(out), np.asarray(ref),
                               rtol=1e-5, atol=1e-5)
    print("KERNEL_OK")
</pallas_src>

<mosaic_0001>
module attributes {stable_mosaic.version = 11 : i64} {
  func.func @_rowsum_full_kernel(%arg0: i32, %arg1: memref<8x256xf32, #tpu.memory_space<vmem>>, %arg2: memref<8x1xf32, #tpu.memory_space<vmem>>) attributes {dimension_semantics = [#tpu.dimension_semantics<parallel>], iteration_bounds = array<i64: 1>, scalar_prefetch = 0 : i64, scratch_operands = 0 : i64, tpu.core_type = #tpu.core_type<tc>, window_params = [{transform_indices = @transform_0, window_bounds = array<i64: 8, 256>}, {transform_indices = @transform_1, window_bounds = array<i64: 8, 1>}]} {
    %c0 = arith.constant 0 : index
    %c0_0 = arith.constant 0 : index
    %0 = vector.load %arg1[%c0, %c0_0] : memref<8x256xf32, #tpu.memory_space<vmem>>, vector<8x256xf32>
    %cst = arith.constant dense<0.000000e+00> : vector<8xf32>
    %1 = vector.multi_reduction <add>, %0, %cst [1] : vector<8x256xf32> to vector<8xf32>
    %2 = vector.shape_cast %1 : vector<8xf32> to vector<8x1xf32>
    %c0_1 = arith.constant 0 : index
    %c0_2 = arith.constant 0 : index
    %3 = vector.load %arg2[%c0_1, %c0_2] : memref<8x1xf32, #tpu.memory_space<vmem>>, vector<8x1xf32>
    tpu.vector_store %arg2[%c0_1, %c0_2], %2 {strides = array<i32>} : memref<8x1xf32, #tpu.memory_space<vmem>>, vector<8x1xf32>,
    return
  }
  func.func @transform_0(%arg0: i32) -> (i32, i32) {
    %c0_i32 = arith.constant 0 : i32
    %c0_i32_0 = arith.constant 0 : i32
    return %arg0, %c0_i32 : i32, i32
  }
  func.func @transform_1(%arg0: i32) -> (i32, i32) {
    %c0_i32 = arith.constant 0 : i32
    %c0_i32_0 = arith.constant 0 : i32
    return %arg0, %c0_i32 : i32, i32
  }
}

</mosaic_0001>

<llo_original>
// kernel: tpu_custom_call.1
$region0: #{tpu_custom_call.1}
  #allocation0 [shape = 'u32[]', space=smem, size = 0x4, offset = 0x4, fixed_abs, tag = 'smem constant byte address 0x4 - core index']
  #allocation1 [shape = 'u32[144,128]{1,0:T(1,128)}', space=vmem, size = 0x12000, scoped, tag = 'internal scratch']
  %s0 = inlined_call_operand.hbm [shape: f32[8,256], index: 0, kind: input, shape index: {}]
  %s1 = inlined_call_operand.vmem [shape: f32[8,1], index: 1, kind: output, shape index: {}]
  %s2 = sld [smem:[#allocation0]]
  $region18: #{tpu_custom_call.1} parent=0
    _
  %s4 = ssub.s32 1, %s2
  %s5 = scalar_select 0, %s4, %s2
  $region1: #{tpu_custom_call.1} parent=0
    #allocation2 [shape = 'u8[8192]{0}', space=vmem, size = 0x2000, scoped, tag = 'input window, operand 0, single buffered']
    #allocation3 [shape = 's32[1]{0}', space=sflag, size = 0x4, scoped, tag = 'scoped memory for tpu_custom_call.1']
    %6 = vsyncpa [#allocation3], 0
    // Predicated region
    $region2: #{tpu_custom_call.1} parent=1 // pred_check
      _
    $region3: #{tpu_custom_call.1} parent=1 // pred_check_branch
      %8 = sbr.rel (0) target = $region5
    $region4: #{tpu_custom_call.1} parent=1 // pred_region
      %s10 = ssub.s32 256, 256
      %11 = vsyncadd [#allocation3], %s10
      %s13 = sshll.u32 [#allocation2], 4
      %s14 = int_to_ptr.vmem [resolvable:$true] %s13
      %16 = dma.hbm_to_vmem [thread:$0]  %s0, 256, %s14, [#allocation3]
    $region5: #{tpu_custom_call.1} parent=1 // pred_fallthru
      _
    // Predicated region
    $region6: #{tpu_custom_call.1} parent=1 // pred_check
      _
    $region7: #{tpu_custom_call.1} parent=1 // pred_check_branch
      %18 = sbr.rel (0) target = $region9
    $region8: #{tpu_custom_call.1} parent=1 // pred_region
      %19 = dma.done [#allocation3], 256
    $region9: #{tpu_custom_call.1} parent=1 // pred_fallthru
      _
    %v20 = vld [vmem:[#allocation2] sm:$0xff]
    %v21 = vld [vmem:[#allocation2 + $0x8] sm:$0xff]
    %v22 = vadd.f32 %v20, %v21
    %23 = vadd.xlane.f32.xlu0 %v22
    %v24 = vpop.xlane.xlu0 %23
    %vm25 = vcmask 7168
    %26 = vst.msk [vmem:[%s1] sm:$0xff] %vm25, %v24
    // Predicated region
    $region10: #{tpu_custom_call.1} parent=1 // pred_check
      _
    $region11: #{tpu_custom_call.1} parent=1 // pred_check_branch
      %28 = sbr.rel (0) target = $region13
    $region12: #{tpu_custom_call.1} parent=1 // pred_region
      _
    $region13: #{tpu_custom_call.1} parent=1 // pred_fallthru
      _
    // Predicated region
    $region14: #{tpu_custom_call.1} parent=1 // pred_check
      _
    $region15: #{tpu_custom_call.1} parent=1 // pred_check_branch
      %30 = sbr.rel (0) target = $region17
    $region16: #{tpu_custom_call.1} parent=1 // pred_region
      _
    $region17: #{tpu_custom_call.1} parent=1 // pred_fallthru
      _
    %31 = vsyncpa [#allocation3], 1

</llo_original>
